<compile_context>
chip_gen: v6e
topology: v6e:2x2x1
jax: 0.10.0
libtpu: 0.0.40
codegen_flags: <defaults>
</compile_context>

<pallas_src>
import functools

import jax
import jax.numpy as jnp
import numpy as np
from jax.experimental import pallas as pl
from jax.experimental.pallas import tpu as pltpu

KSIZE = 3
LANE = 128


def _round_up(x, m):
    return (x + m - 1) // m * m


def _stem_kernel(wp, a_rows, x_ref, w_ref, b_ref, pool_ref, out_ref):
    """One image per grid step: 3x3 'same' conv + bias + ReLU + global avg pool.

    x_ref    : (R3p, 3C) bf16  kj-overlapped, channel-last padded image rows
    w_ref    : (3, 3C, Fp) bf16  per-kernel-row weight slabs (F zero-padded)
    b_ref    : (1, Fp)  f32    conv bias (zero in padded feature columns)
    pool_ref : (1, A)   bf16   validity mask * 1/(H*W), shared by all images
    out_ref  : (1, Fp)  f32    pooled features, lane dense
    """
    # Implicit im2col at kernel-row granularity: the kj=0..2 taps of row ki are
    # adjacent lane groups of one (A, 3C) window, so each ki is a single MXU
    # contraction.  Accumulate in registers -- no VMEM accumulator round trips.
    acc = None
    for ki in range(KSIZE):
        lhs = x_ref[pl.ds(ki * wp, a_rows), :]                       # (A, 3C) bf16
        contrib = jnp.dot(lhs, w_ref[ki],
                          preferred_element_type=jnp.float32)         # (A, Fp) f32
        acc = contrib if acc is None else acc + contrib

    s = jnp.maximum(acc + b_ref[...], 0.0)                            # f32 epilogue

    # Per-image global average pool on the MXU with bf16 operands:
    # (1, A) @ (A, Fp).  Invalid / padded anchors carry weight 0.
    out_ref[...] = jnp.dot(pool_ref[...], s.astype(jnp.bfloat16),
                           preferred_element_type=jnp.float32)


def _fused_inception_stem(x, weight, bias):
    """Returns pooled features as a lane-dense (N, 1, Fp) slab, Fp = 128-pad."""
    N, C, H, W = x.shape
    F = weight.shape[0]
    pad = KSIZE // 2
    Hp, Wp = H + 2 * pad, W + 2 * pad
    Mi = Hp * Wp
    C3 = KSIZE * C
    Fp = _round_up(F, LANE)
    # Anchor rows (top-left tap positions) covering every valid output pixel.
    A = _round_up((H - 1) * Wp + W, 16)
    # Rows of the overlapped slab touched by the three row-window reads.
    R3p = _round_up(A + (KSIZE - 1) * Wp, 16)

    # ---- host-side prep (once): ~3x the raw image in HBM, everything bf16 ----
    xp = jnp.pad(x, ((0, 0), (0, 0), (pad, pad), (pad, pad)))         # (N, C, Hp, Wp)
    xf = jnp.transpose(xp, (0, 2, 3, 1)).reshape(N, Mi, C)            # row = pi*Wp + pj
    xf = jnp.pad(xf, ((0, 0), (0, R3p + KSIZE - 1 - Mi), (0, 0)))
    # kj-overlap: row r carries channels of flat rows r, r+1, r+2 (lane dim 3C),
    # so every tap read in the kernel is full-lane-width at an even sublane offset.
    x3 = jnp.concatenate([xf[:, kj:kj + R3p, :] for kj in range(KSIZE)], axis=2)
    x3 = x3.astype(jnp.bfloat16)                                       # (N, R3p, 3C)

    # Per-kernel-row weight slabs: w3[ki, kj*C + c, f] = weight[f, c, ki, kj].
    w3 = jnp.transpose(weight, (2, 3, 1, 0)).reshape(KSIZE, C3, F)
    w3 = jnp.pad(w3, ((0, 0), (0, 0), (0, Fp - F))).astype(jnp.bfloat16)

    b_row = jnp.pad(bias.astype(jnp.float32), (0, Fp - F)).reshape(1, Fp)

    # Shared validity / pooling row: 1/(H*W) at valid conv anchors, else 0.
    a = np.arange(A)
    valid = ((a // Wp) < H) & ((a % Wp) < W)
    pool_row = jnp.asarray((valid.astype(np.float32) / float(H * W))[None, :],
                           dtype=jnp.bfloat16)                         # (1, A)

    kernel = functools.partial(_stem_kernel, Wp, A)
    return pl.pallas_call(
        kernel,
        out_shape=jax.ShapeDtypeStruct((N, 1, Fp), jnp.float32),
        grid=(N,),
        in_specs=[
            pl.BlockSpec((None, R3p, C3), lambda n: (n, 0, 0)),        # per-image rows
            pl.BlockSpec((KSIZE, C3, Fp), lambda n: (0, 0, 0)),        # resident weights
            pl.BlockSpec((1, Fp), lambda n: (0, 0)),                   # resident bias
            pl.BlockSpec((1, A), lambda n: (0, 0)),                    # resident pool row
        ],
        out_specs=pl.BlockSpec((None, 1, Fp), lambda n: (n, 0, 0)),
        compiler_params=pltpu.CompilerParams(
            dimension_semantics=("parallel",)),
    )(x3, w3, b_row, pool_row)


def synthetic_fid_incv3(x, weight, bias):
    """Synthetic stand-in for pytorch-fid InceptionV3: returns a list with one
    (N, F, 1, 1) feature map, like the real module does."""
    N = x.shape[0]
    F = weight.shape[0]
    feats = _fused_inception_stem(x, weight, bias)[:, 0, :F]
    return [feats.reshape(N, F, 1, 1)]


def wrapper_inception_v3_forward(x, weight, bias):
    """Exact semantics of WrapperInceptionV3.forward: y = fid_incv3(x)[0][:, :, 0, 0].
    The (N, F, 1, 1) -> (N, F) slice collapses to one static slice of the
    kernel's lane-padded output."""
    F = weight.shape[0]
    return _fused_inception_stem(x, weight, bias)[:, 0, :F]


def _reference(x, weight, bias):
    """Plain-JAX f32 reference for the synthetic backbone + wrapper slicing."""
    out = jax.lax.conv_general_dilated(
        x.astype(jnp.float32), weight.astype(jnp.float32),
        window_strides=(1, 1), padding="SAME",
        dimension_numbers=("NCHW", "OIHW", "NCHW"))
    out = jnp.maximum(out + bias[None, :, None, None], 0.0)
    return jnp.mean(out, axis=(2, 3))                                  # (N, F)


if __name__ == "__main__":
    # Small shapes consistent with the wrapper: NCHW image in, (N, F) features out.
    N, C, H, W = 2, 4, 16, 16
    F = 64   # stands in for the 2048-dim InceptionV3 pool3 features

    key = jax.random.PRNGKey(0)
    kx, kw, kb = jax.random.split(key, 3)
    x = jax.random.normal(kx, (N, C, H, W), dtype=jnp.float32)
    weight = jax.random.normal(kw, (F, C, 3, 3), dtype=jnp.float32) * 0.05
    bias = jax.random.normal(kb, (F,), dtype=jnp.float32) * 0.01

    out = wrapper_inception_v3_forward(x, weight, bias)
    out = jax.block_until_ready(out)

    ref = _reference(x, weight, bias)
    assert out.shape == (N, F), out.shape
    # bf16 MXU operands (conv + pool) -> looser tolerance than the f32 reference.
    err = float(jnp.max(jnp.abs(out - ref)))
    assert jnp.allclose(out, ref, atol=1e-2, rtol=1e-2), err

    print("KERNEL_OK")
</pallas_src>

<mosaic_0001>
module attributes {stable_mosaic.version = 11 : i64} {
  func.func @_stem_kernel(%arg0: i32, %arg1: memref<1x336x12xbf16, #tpu.memory_space<vmem>>, %arg2: memref<3x12x128xbf16, #tpu.memory_space<vmem>>, %arg3: memref<1x128xf32, #tpu.memory_space<vmem>>, %arg4: memref<1x288xbf16, #tpu.memory_space<vmem>>, %arg5: memref<1x1x128xf32, #tpu.memory_space<vmem>>) attributes {dimension_semantics = [#tpu.dimension_semantics<parallel>], iteration_bounds = array<i64: 2>, scalar_prefetch = 0 : i64, scratch_operands = 0 : i64, tpu.core_type = #tpu.core_type<tc>, window_params = [{transform_indices = @transform_0, window_bounds = array<i64: 1, 336, 12>}, {pipeline_mode = #tpu.pipeline_mode<synchronous>, transform_indices = @transform_1, window_bounds = array<i64: 3, 12, 128>}, {pipeline_mode = #tpu.pipeline_mode<synchronous>, transform_indices = @transform_2, window_bounds = array<i64: 1, 128>}, {pipeline_mode = #tpu.pipeline_mode<synchronous>, transform_indices = @transform_3, window_bounds = array<i64: 1, 288>}, {transform_indices = @transform_4, window_bounds = array<i64: 1, 1, 128>}]} {
    %c0 = arith.constant 0 : index
    %c0_0 = arith.constant 0 : index
    %c0_1 = arith.constant 0 : index
    %0 = vector.load %arg1[%c0, %c0_0, %c0_1] : memref<1x336x12xbf16, #tpu.memory_space<vmem>>, vector<1x288x12xbf16>
    %1 = vector.shape_cast %0 : vector<1x288x12xbf16> to vector<288x12xbf16>
    %c0_2 = arith.constant 0 : index
    %c0_3 = arith.constant 0 : index
    %c0_4 = arith.constant 0 : index
    %2 = vector.load %arg2[%c0_2, %c0_3, %c0_4] : memref<3x12x128xbf16, #tpu.memory_space<vmem>>, vector<1x12x128xbf16>
    %3 = vector.shape_cast %2 : vector<1x12x128xbf16> to vector<12x128xbf16>
    %cst = arith.constant dense<0.000000e+00> : vector<288x128xf32>
    %4 = tpu.matmul %1, %3, %cst {dimension_numbers = #tpu.dot_dimension_numbers<[1], [0], [0], [1], [0, 0, 1, 1], [], []>} : vector<288x12xbf16>, vector<12x128xbf16>, vector<288x128xf32> -> vector<288x128xf32>
    %c0_5 = arith.constant 0 : index
    %c18 = arith.constant 18 : index
    %c0_6 = arith.constant 0 : index
    %5 = vector.load %arg1[%c0_5, %c18, %c0_6] : memref<1x336x12xbf16, #tpu.memory_space<vmem>>, vector<1x288x12xbf16>
    %6 = vector.shape_cast %5 : vector<1x288x12xbf16> to vector<288x12xbf16>
    %c1 = arith.constant 1 : index
    %c0_7 = arith.constant 0 : index
    %c0_8 = arith.constant 0 : index
    %7 = vector.load %arg2[%c1, %c0_7, %c0_8] : memref<3x12x128xbf16, #tpu.memory_space<vmem>>, vector<1x12x128xbf16>
    %8 = vector.shape_cast %7 : vector<1x12x128xbf16> to vector<12x128xbf16>
    %cst_9 = arith.constant dense<0.000000e+00> : vector<288x128xf32>
    %9 = tpu.matmul %6, %8, %cst_9 {dimension_numbers = #tpu.dot_dimension_numbers<[1], [0], [0], [1], [0, 0, 1, 1], [], []>} : vector<288x12xbf16>, vector<12x128xbf16>, vector<288x128xf32> -> vector<288x128xf32>
    %10 = arith.addf %4, %9 : vector<288x128xf32>
    %c0_10 = arith.constant 0 : index
    %c36 = arith.constant 36 : index
    %c0_11 = arith.constant 0 : index
    %11 = vector.load %arg1[%c0_10, %c36, %c0_11] : memref<1x336x12xbf16, #tpu.memory_space<vmem>>, vector<1x288x12xbf16>
    %12 = vector.shape_cast %11 : vector<1x288x12xbf16> to vector<288x12xbf16>
    %c2 = arith.constant 2 : index
    %c0_12 = arith.constant 0 : index
    %c0_13 = arith.constant 0 : index
    %13 = vector.load %arg2[%c2, %c0_12, %c0_13] : memref<3x12x128xbf16, #tpu.memory_space<vmem>>, vector<1x12x128xbf16>
    %14 = vector.shape_cast %13 : vector<1x12x128xbf16> to vector<12x128xbf16>
    %cst_14 = arith.constant dense<0.000000e+00> : vector<288x128xf32>
    %15 = tpu.matmul %12, %14, %cst_14 {dimension_numbers = #tpu.dot_dimension_numbers<[1], [0], [0], [1], [0, 0, 1, 1], [], []>} : vector<288x12xbf16>, vector<12x128xbf16>, vector<288x128xf32> -> vector<288x128xf32>
    %16 = arith.addf %10, %15 : vector<288x128xf32>
    %c0_15 = arith.constant 0 : index
    %c0_16 = arith.constant 0 : index
    %17 = vector.load %arg3[%c0_15, %c0_16] : memref<1x128xf32, #tpu.memory_space<vmem>>, vector<1x128xf32>
    %18 = vector.broadcast %17 : vector<1x128xf32> to vector<288x128xf32>
    %19 = arith.addf %16, %18 : vector<288x128xf32>
    %cst_17 = arith.constant 0.000000e+00 : f32
    %20 = vector.broadcast %cst_17 : f32 to vector<288x128xf32>
    %21 = arith.maximumf %19, %20 : vector<288x128xf32>
    %c0_18 = arith.constant 0 : index
    %c0_19 = arith.constant 0 : index
    %22 = vector.load %arg4[%c0_18, %c0_19] : memref<1x288xbf16, #tpu.memory_space<vmem>>, vector<1x288xbf16>
    %23 = arith.truncf %21 : vector<288x128xf32> to vector<288x128xbf16>
    %cst_20 = arith.constant dense<0.000000e+00> : vector<1x128xf32>
    %24 = tpu.matmul %22, %23, %cst_20 {dimension_numbers = #tpu.dot_dimension_numbers<[1], [0], [0], [1], [0, 0, 1, 1], [], []>} : vector<1x288xbf16>, vector<288x128xbf16>, vector<1x128xf32> -> vector<1x128xf32>
    %c0_21 = arith.constant 0 : index
    %c0_22 = arith.constant 0 : index
    %c0_23 = arith.constant 0 : index
    %25 = vector.load %arg5[%c0_21, %c0_22, %c0_23] : memref<1x1x128xf32, #tpu.memory_space<vmem>>, vector<1x1x128xf32>
    %26 = vector.shape_cast %25 : vector<1x1x128xf32> to vector<1x128xf32>
    %27 = vector.shape_cast %24 : vector<1x128xf32> to vector<1x1x128xf32>
    tpu.vector_store %arg5[%c0_21, %c0_22, %c0_23], %27 {strides = array<i32>} : memref<1x1x128xf32, #tpu.memory_space<vmem>>, vector<1x1x128xf32>,
    return
  }
  func.func @transform_0(%arg0: i32) -> (i32, i32, i32) {
    %c0_i32 = arith.constant 0 : i32
    %c0_i32_0 = arith.constant 0 : i32
    %c0_i32_1 = arith.constant 0 : i32
    return %arg0, %c0_i32, %c0_i32_0 : i32, i32, i32
  }
  func.func @transform_1(%arg0: i32) -> (i32, i32, i32) {
    %c0_i32 = arith.constant 0 : i32
    %c0_i32_0 = arith.constant 0 : i32
    %c0_i32_1 = arith.constant 0 : i32
    %c0_i32_2 = arith.constant 0 : i32
    return %c0_i32, %c0_i32_0, %c0_i32_1 : i32, i32, i32
  }
  func.func @transform_2(%arg0: i32) -> (i32, i32) {
    %c0_i32 = arith.constant 0 : i32
    %c0_i32_0 = arith.constant 0 : i32
    %c0_i32_1 = arith.constant 0 : i32
    return %c0_i32, %c0_i32_0 : i32, i32
  }
  func.func @transform_3(%arg0: i32) -> (i32, i32) {
    %c0_i32 = arith.constant 0 : i32
    %c0_i32_0 = arith.constant 0 : i32
    %c0_i32_1 = arith.constant 0 : i32
    return %c0_i32, %c0_i32_0 : i32, i32
  }
  func.func @transform_4(%arg0: i32) -> (i32, i32, i32) {
    %c0_i32 = arith.constant 0 : i32
    %c0_i32_0 = arith.constant 0 : i32
    %c0_i32_1 = arith.constant 0 : i32
    return %arg0, %c0_i32, %c0_i32_0 : i32, i32, i32
  }
}

</mosaic_0001>

<llo_original>
// kernel: tpu_custom_call.1
$region0: #{tpu_custom_call.1}
  #allocation0 [shape = 'u32[]', space=smem, size = 0x4, offset = 0x4, fixed_abs, tag = 'smem constant byte address 0x4 - core index']
  #allocation1 [shape = 'u32[144,128]{1,0:T(1,128)}', space=vmem, size = 0x12000, scoped, tag = 'internal scratch']
  %s0 = inlined_call_operand.vmem [shape: bf16[2,336,12], index: 0, kind: input, shape index: {}]
  %s1 = inlined_call_operand.vmem [shape: bf16[3,12,128], index: 1, kind: input, shape index: {}]
  %s2 = inlined_call_operand.vmem [shape: f32[1,128], index: 2, kind: input, shape index: {}]
  %s3 = inlined_call_operand.vmem [shape: bf16[1,288], index: 3, kind: input, shape index: {}]
  %s4 = inlined_call_operand.hbm [shape: f32[2,1,128], index: 4, kind: output, shape index: {}]
  %s5 = sld [smem:[#allocation0]]
  $region49: #{tpu_custom_call.1} parent=0
    _
  %s7 = ssub.s32 1, %s5
  %s8 = scalar_select 0, %s7, %s5
  $region1: #{tpu_custom_call.1} parent=0
    #allocation2 [shape = 'u8[1024]{0}', space=vmem, size = 0x400, scoped, tag = 'output window, operand 0']
    #allocation3 [shape = 's32[2]{0}', space=sflag, size = 0x8, scoped, tag = 'scoped memory for tpu_custom_call.1']
    %9 = vsyncpa [#allocation3], 0
    %s10 = scalar_lea.sflag [#allocation3], 1
    %11 = vsyncpa %s10, 0
    loop: start=0, step=1, limit=4
    $region2: #{tpu_custom_call.1} parent=1 // loop_pre_header
      _
    $region3: #{tpu_custom_call.1} parent=1 // loop_header
      %s13 = sphi 0, %s17
      %p14 = scmp.ge.s32.totalorder %s13, 4
      %s23 = sphi 0, %s25
      %s26 = sphi 0, %s23
      %s27 = sphi 0, %s26
      %s43 = sphi 0, %s27
      %s47 = sphi 0, %s47
      %s49 = sphi 0, %s47
      %s50 = sphi 0, %s49
      %s64 = sphi 0, %s50
      %s68 = sphi 0, %s68
      %s70 = sphi 0, %s68
      %s71 = sphi 0, %s70
      %s85 = sphi 0, %s71
      %s89 = sphi 0, %s89
      %s91 = sphi 0, %s89
      %s92 = sphi 0, %s91
      %s106 = sphi 0, %s92
      %s112 = sphi 0, %s114
      %s115 = sphi 0, %s112
      %s116 = sphi 0, %s115
      %s132 = sphi 0, %s116
    $region4: #{tpu_custom_call.1} parent=1 // loop_header_branch
      %16 = sbr.rel (%p14) target = $region8
    $region5: #{tpu_custom_call.1} parent=1 // loop_body
      %s18 = ssub.s32 %s13, 1
      %s19 = ssub.s32 %s13, 2
      %s20 = sadd.s32 %s13, 1
      %s21 = ssub.s32 %s13, %s20
      %p22 = scmp.eq.s32.totalorder %s21, 0
      %s24 = sadd.s32 %s23, 1
      %s25 = scalar_select %p22, %s23, %s24
      %p28 = pneg %p22
      %p29 = scmp.eq.s32.totalorder %s13, 1
      %p30 = por %p28, %p29
      %p31 = scmp.ne.s32.totalorder %s23, %s26
      %p32 = scmp.eq.s32.totalorder %s13, 0
      %p33 = por %p31, %p32
      %p34 = scmp.ne.s32.totalorder %s23, %s26
      %p35 = scmp.eq.s32.totalorder %s18, 1
      %p36 = por %p34, %p35
      %p37 = scmp.ne.s32.totalorder %s26, %s27
      %p38 = scmp.eq.s32.totalorder %s18, 0
      %p39 = por %p37, %p38
      %p40 = scmp.ne.s32.totalorder %s26, %s27
      %p41 = scmp.eq.s32.totalorder %s19, 1
      %p42 = por %p40, %p41
      %p44 = scmp.ne.s32.totalorder %s27, %s43
      %p45 = scmp.eq.s32.totalorder %s19, 0
      %p46 = por %p44, %p45
      %s48 = sadd.s32 %s47, 1
      %p51 = scmp.eq.s32.totalorder %s13, 1
      %p52 = scmp.ne.s32.totalorder %s47, %s49
      %p53 = scmp.eq.s32.totalorder %s13, 0
      %p54 = por %p52, %p53
      %p55 = scmp.ne.s32.totalorder %s47, %s49
      %p56 = scmp.eq.s32.totalorder %s18, 1
      %p57 = por %p55, %p56
      %p58 = scmp.ne.s32.totalorder %s49, %s50
      %p59 = scmp.eq.s32.totalorder %s18, 0
      %p60 = por %p58, %p59
      %p61 = scmp.ne.s32.totalorder %s49, %s50
      %p62 = scmp.eq.s32.totalorder %s19, 1
      %p63 = por %p61, %p62
      %p65 = scmp.ne.s32.totalorder %s50, %s64
      %p66 = scmp.eq.s32.totalorder %s19, 0
      %p67 = por %p65, %p66
      %s69 = sadd.s32 %s68, 1
      %p72 = scmp.eq.s32.totalorder %s13, 1
      %p73 = scmp.ne.s32.totalorder %s68, %s70
      %p74 = scmp.eq.s32.totalorder %s13, 0
      %p75 = por %p73, %p74
      %p76 = scmp.ne.s32.totalorder %s68, %s70
      %p77 = scmp.eq.s32.totalorder %s18, 1
      %p78 = por %p76, %p77
      %p79 = scmp.ne.s32.totalorder %s70, %s71
      %p80 = scmp.eq.s32.totalorder %s18, 0
      %p81 = por %p79, %p80
      %p82 = scmp.ne.s32.totalorder %s70, %s71
      %p83 = scmp.eq.s32.totalorder %s19, 1
      %p84 = por %p82, %p83
      %p86 = scmp.ne.s32.totalorder %s71, %s85
      %p87 = scmp.eq.s32.totalorder %s19, 0
      %p88 = por %p86, %p87
      %s90 = sadd.s32 %s89, 1
      %p93 = scmp.eq.s32.totalorder %s13, 1
      %p94 = scmp.ne.s32.totalorder %s89, %s91
      %p95 = scmp.eq.s32.totalorder %s13, 0
      %p96 = por %p94, %p95
      %p97 = scmp.ne.s32.totalorder %s89, %s91
      %p98 = scmp.eq.s32.totalorder %s18, 1
      %p99 = por %p97, %p98
      %p100 = scmp.ne.s32.totalorder %s91, %s92
      %p101 = scmp.eq.s32.totalorder %s18, 0
      %p102 = por %p100, %p101
      %p103 = scmp.ne.s32.totalorder %s91, %s92
      %p104 = scmp.eq.s32.totalorder %s19, 1
      %p105 = por %p103, %p104
      %p107 = scmp.ne.s32.totalorder %s92, %s106
      %p108 = scmp.eq.s32.totalorder %s19, 0
      %p109 = por %p107, %p108
      %s110 = ssub.s32 %s13, %s20
      %p111 = scmp.eq.s32.totalorder %s110, 0
      %s113 = sadd.s32 %s112, 1
      %s114 = scalar_select %p111, %s112, %s113
      %p117 = pneg %p111
      %p118 = scmp.eq.s32.totalorder %s13, 1
      %p119 = por %p117, %p118
      %p120 = scmp.ne.s32.totalorder %s112, %s115
      %p121 = scmp.eq.s32.totalorder %s13, 0
      %p122 = por %p120, %p121
      %p123 = scmp.ne.s32.totalorder %s112, %s115
      %p124 = scmp.eq.s32.totalorder %s18, 1
      %p125 = por %p123, %p124
      %p126 = scmp.ne.s32.totalorder %s115, %s116
      %p127 = scmp.eq.s32.totalorder %s18, 0
      %p128 = por %p126, %p127
      %p129 = scmp.ne.s32.totalorder %s115, %s116
      %p130 = scmp.eq.s32.totalorder %s19, 1
      %p131 = por %p129, %p130
      %p133 = scmp.ne.s32.totalorder %s116, %s132
      %p134 = scmp.eq.s32.totalorder %s19, 0
      %p135 = por %p133, %p134
      %p136 = scmp.le.s32.totalorder 1, %s13
      %p137 = scmp.lt.s32.totalorder %s13, 3
      %p138 = pnand %p136, %p137
      %p139 = pneg %p138
      // Predicated region
      $region9: #{tpu_custom_call.1} parent=5 // pred_check
        _
      $region10: #{tpu_custom_call.1} parent=5 // pred_check_branch
        %141 = sbr.rel (%p138) target = $region12
      $region11: #{tpu_custom_call.1} parent=5 // pred_region
        %s142 = ssub.s32 %s13, 1
        // Predicated region
        $region13: #{tpu_custom_call.1} parent=11 // pred_check
          %p143 = pneg %p60
        $region14: #{tpu_custom_call.1} parent=11 // pred_check_branch
          %145 = sbr.rel (%p143) target = $region16
        $region15: #{tpu_custom_call.1} parent=11 // pred_region
          _
        $region16: #{tpu_custom_call.1} parent=11 // pred_fallthru
          _
        // Predicated region
        $region17: #{tpu_custom_call.1} parent=11 // pred_check
          %p146 = pneg %p81
        $region18: #{tpu_custom_call.1} parent=11 // pred_check_branch
          %148 = sbr.rel (%p146) target = $region20
        $region19: #{tpu_custom_call.1} parent=11 // pred_region
          _
        $region20: #{tpu_custom_call.1} parent=11 // pred_fallthru
          _
        // Predicated region
        $region21: #{tpu_custom_call.1} parent=11 // pred_check
          %p149 = pneg %p102
        $region22: #{tpu_custom_call.1} parent=11 // pred_check_branch
          %151 = sbr.rel (%p149) target = $region24
        $region23: #{tpu_custom_call.1} parent=11 // pred_region
          _
        $region24: #{tpu_custom_call.1} parent=11 // pred_fallthru
          _
      $region12: #{tpu_custom_call.1} parent=5 // pred_fallthru
        _
      %p152 = scmp.lt.s32.totalorder %s13, 2
      // Predicated region
      $region25: #{tpu_custom_call.1} parent=5 // pred_check
        %p153 = pneg %p152
      $region26: #{tpu_custom_call.1} parent=5 // pred_check_branch
        %155 = sbr.rel (%p153) target = $region28
      $region27: #{tpu_custom_call.1} parent=5 // pred_region
        // Predicated region
        $region29: #{tpu_custom_call.1} parent=27 // pred_check
          %p156 = pneg %p33
        $region30: #{tpu_custom_call.1} parent=27 // pred_check_branch
          %158 = sbr.rel (%p156) target = $region32
        $region31: #{tpu_custom_call.1} parent=27 // pred_region
          %p159 = scmp.lt.s32.totalorder %s13, 1
          %s160 = scalar_select %p159, %s13, 1
          %s161 = smul.addr %s160, 42
          %s162 = smul.addr %s161, 4
          %s163 = scalar_lea.vmem %s0, %s162
        $region32: #{tpu_custom_call.1} parent=27 // pred_fallthru
          _
      $region28: #{tpu_custom_call.1} parent=5 // pred_fallthru
        _
      %p164 = scmp.le.s32.totalorder 1, %s13
      %p165 = scmp.lt.s32.totalorder %s13, 3
      %p166 = pnand %p164, %p165
      %p167 = pneg %p166
      // Predicated region
      $region33: #{tpu_custom_call.1} parent=5 // pred_check
        _
      $region34: #{tpu_custom_call.1} parent=5 // pred_check_branch
        %169 = sbr.rel (%p166) target = $region36
      $region35: #{tpu_custom_call.1} parent=5 // pred_region
        %s170 = ssub.s32 %s13, 1
        %p171 = scmp.lt.s32.totalorder %s18, 1
        %s172 = scalar_select %p171, %s18, 1
        %s173 = smul.addr %s172, 42
        %s174 = smul.addr %s173, 4
        %s175 = scalar_lea.vmem %s0, %s174
        %p176 = pneg %p39
        %p177 = pneg %p36
        %p178 = pneg %p60
        %p179 = pneg %p57
        %p180 = pneg %p81
        %p181 = pneg %p78
        %p182 = pneg %p102
        %p183 = pneg %p99
        %p184 = pneg %p128
        %p185 = pneg %p125
        %s186 = sand.u32 %s115, 1
        %s187 = scalar_lea.sflag [#allocation3], %s186
        %s188 = sand.u32 %s115, 1
        %s189 = scalar_lea.vmem [#allocation2], %s188
        %p190 = scmp.lt.s32.totalorder %s18, 1
        %s191 = scalar_select %p190, %s18, 1
        %s192 = smul.addr %s191, 42
        %s193 = smul.addr %s192, 4
        %s194 = scalar_lea.vmem %s0, %s193
        %v196 = vld [vmem:[%s194] sm:$0xf]
        %v197 = vld [vmem:[%s194 + $0x4] sm:$0xf]
        %v198 = vld [vmem:[%s194 + $0x8] sm:$0xf]
        %v199 = vld [vmem:[%s194 + $0xc] sm:$0xf]
        %v200 = vld [vmem:[%s194 + $0x10] sm:$0xf]
        %v201 = vld [vmem:[%s194 + $0x14] sm:$0xf]
        %v202 = vld [vmem:[%s194 + $0x18] sm:$0xf]
        %v203 = vld [vmem:[%s194 + $0x1c] sm:$0xf]
        %v204 = vld [vmem:[%s194 + $0x20] sm:$0xf]
        %v205 = vld [vmem:[%s194 + $0x24] sm:$0xf]
        %v206 = vld [vmem:[%s194 + $0x28] sm:$0xf]
        %v207 = vld [vmem:[%s194 + $0x2c] sm:$0xf]
        %v208 = vld [vmem:[%s194 + $0x30] sm:$0xf]
        %v209 = vld [vmem:[%s194 + $0x34] sm:$0xf]
        %v210 = vld [vmem:[%s194 + $0x38] sm:$0xf]
        %v211 = vld [vmem:[%s194 + $0x3c] sm:$0xf]
        %v212 = vld [vmem:[%s194 + $0x40] sm:$0xf]
        %v213 = vld [vmem:[%s194 + $0x44] sm:$0xf]
        %v214 = vld [vmem:[%s194 + $0x48] sm:$0xf]
        %v215 = vld [vmem:[%s194 + $0x4c] sm:$0xf]
        %v216 = vld [vmem:[%s194 + $0x50] sm:$0xf]
        %v217 = vld [vmem:[%s194 + $0x54] sm:$0xf]
        %v218 = vld [vmem:[%s194 + $0x58] sm:$0xf]
        %v219 = vld [vmem:[%s194 + $0x5c] sm:$0xf]
        %v220 = vld [vmem:[%s194 + $0x60] sm:$0xf]
        %v221 = vld [vmem:[%s194 + $0x64] sm:$0xf]
        %v222 = vld [vmem:[%s194 + $0x68] sm:$0xf]
        %v223 = vld [vmem:[%s194 + $0x6c] sm:$0xf]
        %v224 = vld [vmem:[%s194 + $0x70] sm:$0xf]
        %v225 = vld [vmem:[%s194 + $0x74] sm:$0xf]
        %v226 = vld [vmem:[%s194 + $0x78] sm:$0xf]
        %v227 = vld [vmem:[%s194 + $0x7c] sm:$0xf]
        %v228 = vld [vmem:[%s194 + $0x80] sm:$0xf]
        %v229 = vld [vmem:[%s194 + $0x84] sm:$0xf]
        %v230 = vld [vmem:[%s194 + $0x88] sm:$0xf]
        %v231 = vld [vmem:[%s194 + $0x8c] sm:$0xf]
        %v232 = vld [vmem:[%s1] sm:$0xf]
        %v233 = vld [vmem:[%s1 + $0x4] sm:$0x3]
        %v234 = vld [vmem:[%s194 + $0x8] sm:$0xe]
        %v235 = vld [vmem:[%s194 + $0x90] sm:$0xf]
        %v236 = vld [vmem:[%s194 + $0x94] sm:$0xf]
        %v237 = vld [vmem:[%s194 + $0x98] sm:$0x1]
        %s238 = scalar_lea.vmem %s1, 8
        %v239 = vld [vmem:[%s238] sm:$0xf]
        %v240 = vld [vmem:[%s238 + $0x4] sm:$0x3]
        %v278 = vunpack.c.l.b16 %v234
        %v279 = vunpack.c.l.b16 %v199
        %v280 = vunpack.c.l.b16 %v200
        %v281 = vunpack.c.l.b16 %v201
        %v282 = vunpack.c.l.b16 %v202
        %v283 = vunpack.c.l.b16 %v203
        %v284 = vunpack.c.l.b16 %v204
        %v285 = vunpack.c.l.b16 %v205
        %v286 = vunpack.c.l.b16 %v206
        %v287 = vunpack.c.l.b16 %v207
        %v288 = vunpack.c.l.b16 %v208
        %v289 = vunpack.c.l.b16 %v209
        %v290 = vunpack.c.l.b16 %v210
        %v291 = vunpack.c.l.b16 %v211
        %v292 = vunpack.c.l.b16 %v212
        %v293 = vunpack.c.l.b16 %v213
        %v294 = vunpack.c.l.b16 %v214
        %v295 = vunpack.c.l.b16 %v215
        %v296 = vunpack.c.l.b16 %v216
        %v297 = vunpack.c.l.b16 %v217
        %v298 = vunpack.c.l.b16 %v218
        %v299 = vunpack.c.l.b16 %v219
        %v300 = vunpack.c.l.b16 %v220
        %v301 = vunpack.c.l.b16 %v221
        %v302 = vunpack.c.l.b16 %v222
        %v303 = vunpack.c.l.b16 %v223
        %v304 = vunpack.c.l.b16 %v224
        %v305 = vunpack.c.l.b16 %v225
        %v306 = vunpack.c.l.b16 %v226
        %v307 = vunpack.c.l.b16 %v227
        %v308 = vunpack.c.l.b16 %v228
        %v309 = vunpack.c.l.b16 %v229
        %v310 = vunpack.c.l.b16 %v230
        %v311 = vunpack.c.l.b16 %v231
        %v312 = vunpack.c.l.b16 %v235
        %v313 = vunpack.c.l.b16 %v236
        %v314 = vunpack.c.l.b16 %v237
        %v315 = vpack.c.b16 %v279, %v278
        %v316 = vpack.c.b16 %v281, %v280
        %v317 = vpack.c.b16 %v283, %v282
        %v318 = vpack.c.b16 %v285, %v284
        %v319 = vpack.c.b16 %v287, %v286
        %v320 = vpack.c.b16 %v289, %v288
        %v321 = vpack.c.b16 %v291, %v290
        %v322 = vpack.c.b16 %v293, %v292
        %v323 = vpack.c.b16 %v295, %v294
        %v324 = vpack.c.b16 %v297, %v296
        %v325 = vpack.c.b16 %v299, %v298
        %v326 = vpack.c.b16 %v301, %v300
        %v327 = vpack.c.b16 %v303, %v302
        %v328 = vpack.c.b16 %v305, %v304
        %v329 = vpack.c.b16 %v307, %v306
        %v330 = vpack.c.b16 %v309, %v308
        %v331 = vpack.c.b16 %v311, %v310
        %v332 = vpack.c.b16 %v313, %v312
        %v333 = vpack.c.b16 %v314, %v314
        %vm334 = vcmask 1046528
        %v335 = vrot.slane %v315, 1
        %v336 = vrot.slane %v316, 1
        %v337 = vsel %vm334, %v335, %v336
        %v338 = vrot.slane %v317, 1
        %v339 = vsel %vm334, %v336, %v338
        %v340 = vrot.slane %v318, 1
        %v341 = vsel %vm334, %v338, %v340
        %v342 = vrot.slane %v319, 1
        %v343 = vsel %vm334, %v340, %v342
        %v344 = vrot.slane %v320, 1
        %v345 = vsel %vm334, %v342, %v344
        %v346 = vrot.slane %v321, 1
        %v347 = vsel %vm334, %v344, %v346
        %v348 = vrot.slane %v322, 1
        %v349 = vsel %vm334, %v346, %v348
        %v350 = vrot.slane %v323, 1
        %v351 = vsel %vm334, %v348, %v350
        %v352 = vrot.slane %v324, 1
        %v353 = vsel %vm334, %v350, %v352
        %v354 = vrot.slane %v325, 1
        %v355 = vsel %vm334, %v352, %v354
        %v356 = vrot.slane %v326, 1
        %v357 = vsel %vm334, %v354, %v356
        %v358 = vrot.slane %v327, 1
        %v359 = vsel %vm334, %v356, %v358
        %v360 = vrot.slane %v328, 1
        %v361 = vsel %vm334, %v358, %v360
        %v362 = vrot.slane %v329, 1
        %v363 = vsel %vm334, %v360, %v362
        %v364 = vrot.slane %v330, 1
        %v365 = vsel %vm334, %v362, %v364
        %v366 = vrot.slane %v331, 1
        %v367 = vsel %vm334, %v364, %v366
        %v368 = vrot.slane %v332, 1
        %v369 = vsel %vm334, %v366, %v368
        %v370 = vrot.slane %v333, 1
        %v371 = vsel %vm334, %v368, %v370
        %v374 = vunpack.c.l.b16 %v239
        %v375 = vunpack.c.l.b16 %v240
        %v376 = vpack.c.b16 %v375, %v374
        %vm377 = vcmask 97280
        %v379 = vsel %vm377, %v337, 0
        %v382 = vsel %vm377, %v339, 0
        %v385 = vsel %vm377, %v341, 0
        %v388 = vsel %vm377, %v343, 0
        %v391 = vsel %vm377, %v345, 0
        %v394 = vsel %vm377, %v347, 0
        %v397 = vsel %vm377, %v349, 0
        %v400 = vsel %vm377, %v351, 0
        %v403 = vsel %vm377, %v353, 0
        %v406 = vsel %vm377, %v355, 0
        %v409 = vsel %vm377, %v357, 0
        %v412 = vsel %vm377, %v359, 0
        %v415 = vsel %vm377, %v361, 0
        %v418 = vsel %vm377, %v363, 0
        %v421 = vsel %vm377, %v365, 0
        %v424 = vsel %vm377, %v367, 0
        %v427 = vsel %vm377, %v369, 0
        %v430 = vsel %vm377, %v371, 0
        %vm432 = vcmask 1045504
        %v434 = vsel %vm432, %v376, 0
        %436 = vmatprep.subr.bf16.mxu0 0
        %437 = vmatpush1.bf16.msra.mxu0 0
        %438 = vmatprep.subr.bf16.mxu0 0
        %439 = vmatpush1.bf16.msra.mxu0 0
        %440 = vmatprep.subr.bf16.mxu0 0
        %441 = vmatpush1.bf16.msra.mxu0 0
        %442 = vmatprep.subr.bf16.mxu0 0
        %443 = vmatpush1.bf16.msra.mxu0 0
        %444 = vmatprep.subr.bf16.mxu0 0
        %445 = vmatpush1.bf16.msra.mxu0 0
        %446 = vmatprep.subr.bf16.mxu0 0
        %447 = vmatpush1.bf16.msra.mxu0 0
        %448 = vmatprep.subr.bf16.mxu0 0
        %449 = vmatpush1.bf16.msra.mxu0 0
        %450 = vmatprep.subr.bf16.mxu0 0
        %451 = vmatpush1.bf16.msra.mxu0 %v434
        %452 = vmatprep.subr.bf16.mxu0 0
        %453 = vmatpush2.bf16.msra.mxu0 0
        %454 = vmatprep.subr.bf16.mxu0 0
        %455 = vmatpush2.bf16.msra.mxu0 0
        %456 = vmatprep.subr.bf16.mxu0 0
        %457 = vmatpush2.bf16.msra.mxu0 0
        %458 = vmatprep.subr.bf16.mxu0 0
        %459 = vmatpush2.bf16.msra.mxu0 0
        %460 = vmatprep.subr.bf16.mxu0 0
        %461 = vmatpush2.bf16.msra.mxu0 0
        %462 = vmatprep.subr.bf16.mxu0 0
        %463 = vmatpush2.bf16.msra.mxu0 0
        %464 = vmatprep.subr.bf16.mxu0 0
        %465 = vmatpush2.bf16.msra.mxu0 0
        %466 = vmatprep.subr.bf16.mxu0 0
        %467 = vmatpush2.bf16.msra.mxu0 0
        %468 = vmatprep.mubr.bf16.mxu0 0
        %469 = vmatmul.mubr.bf16.gmra.mxu0 %v379
        %v470 = vpop.f32.mrf.mxu0
        %v471 = vadd.f32 0.0, %v470
        %v472 = vpop.f32.mrf.mxu0
        %v473 = vpop.f32.mrf.mxu0
        %v474 = vadd.f32 0.0, %v473
        %v475 = vpop.f32.mrf.mxu0
        %476 = vmatprep.mubr.bf16.mxu0 0
        %477 = vmatmul.mubr.bf16.gmra.mxu0 %v382
        %v478 = vpop.f32.mrf.mxu0
        %v479 = vadd.f32 0.0, %v478
        %v480 = vpop.f32.mrf.mxu0
        %v481 = vpop.f32.mrf.mxu0
        %v482 = vadd.f32 0.0, %v481
        %v483 = vpop.f32.mrf.mxu0
        %484 = vmatprep.mubr.bf16.mxu0 0
        %485 = vmatmul.mubr.bf16.gmra.mxu0 %v385
        %v486 = vpop.f32.mrf.mxu0
        %v487 = vadd.f32 0.0, %v486
        %v488 = vpop.f32.mrf.mxu0
        %v489 = vpop.f32.mrf.mxu0
        %v490 = vadd.f32 0.0, %v489
        %v491 = vpop.f32.mrf.mxu0
        %492 = vmatprep.mubr.bf16.mxu0 0
        %493 = vmatmul.mubr.bf16.gmra.mxu0 %v388
        %v494 = vpop.f32.mrf.mxu0
        %v495 = vadd.f32 0.0, %v494
        %v496 = vpop.f32.mrf.mxu0
        %v497 = vpop.f32.mrf.mxu0
        %v498 = vadd.f32 0.0, %v497
        %v499 = vpop.f32.mrf.mxu0
        %500 = vmatprep.mubr.bf16.mxu0 0
        %501 = vmatmul.mubr.bf16.gmra.mxu0 %v391
        %v502 = vpop.f32.mrf.mxu0
        %v503 = vadd.f32 0.0, %v502
        %v504 = vpop.f32.mrf.mxu0
        %v505 = vpop.f32.mrf.mxu0
        %v506 = vadd.f32 0.0, %v505
        %v507 = vpop.f32.mrf.mxu0
        %508 = vmatprep.mubr.bf16.mxu0 0
        %509 = vmatmul.mubr.bf16.gmra.mxu0 %v394
        %v510 = vpop.f32.mrf.mxu0
        %v511 = vadd.f32 0.0, %v510
        %v512 = vpop.f32.mrf.mxu0
        %v513 = vpop.f32.mrf.mxu0
        %v514 = vadd.f32 0.0, %v513
        %v515 = vpop.f32.mrf.mxu0
        %516 = vmatprep.mubr.bf16.mxu0 0
        %517 = vmatmul.mubr.bf16.gmra.mxu0 %v397
        %v518 = vpop.f32.mrf.mxu0
        %v519 = vadd.f32 0.0, %v518
        %v520 = vpop.f32.mrf.mxu0
        %v521 = vpop.f32.mrf.mxu0
        %v522 = vadd.f32 0.0, %v521
        %v523 = vpop.f32.mrf.mxu0
        %524 = vmatprep.mubr.bf16.mxu0 0
        %525 = vmatmul.mubr.bf16.gmra.mxu0 %v400
        %v526 = vpop.f32.mrf.mxu0
        %v527 = vadd.f32 0.0, %v526
        %v528 = vpop.f32.mrf.mxu0
        %v529 = vpop.f32.mrf.mxu0
        %v530 = vadd.f32 0.0, %v529
        %v531 = vpop.f32.mrf.mxu0
        %532 = vmatprep.mubr.bf16.mxu0 0
        %533 = vmatmul.mubr.bf16.gmra.mxu0 %v403
        %v534 = vpop.f32.mrf.mxu0
        %v535 = vadd.f32 0.0, %v534
        %v536 = vpop.f32.mrf.mxu0
        %v537 = vpop.f32.mrf.mxu0
        %v538 = vadd.f32 0.0, %v537
        %v539 = vpop.f32.mrf.mxu0
        %540 = vmatprep.mubr.bf16.mxu0 0
        %541 = vmatmul.mubr.bf16.gmra.mxu0 %v406
        %v542 = vpop.f32.mrf.mxu0
        %v543 = vadd.f32 0.0, %v542
        %v544 = vpop.f32.mrf.mxu0
        %v545 = vpop.f32.mrf.mxu0
        %v546 = vadd.f32 0.0, %v545
        %v547 = vpop.f32.mrf.mxu0
        %548 = vmatprep.mubr.bf16.mxu0 0
        %549 = vmatmul.mubr.bf16.gmra.mxu0 %v409
        %v550 = vpop.f32.mrf.mxu0
        %v551 = vadd.f32 0.0, %v550
        %v552 = vpop.f32.mrf.mxu0
        %v553 = vpop.f32.mrf.mxu0
        %v554 = vadd.f32 0.0, %v553
        %v555 = vpop.f32.mrf.mxu0
        %556 = vmatprep.mubr.bf16.mxu0 0
        %557 = vmatmul.mubr.bf16.gmra.mxu0 %v412
        %v558 = vpop.f32.mrf.mxu0
        %v559 = vadd.f32 0.0, %v558
        %v560 = vpop.f32.mrf.mxu0
        %v561 = vpop.f32.mrf.mxu0
        %v562 = vadd.f32 0.0, %v561
        %v563 = vpop.f32.mrf.mxu0
        %564 = vmatprep.mubr.bf16.mxu0 0
        %565 = vmatmul.mubr.bf16.gmra.mxu0 %v415
        %v566 = vpop.f32.mrf.mxu0
        %v567 = vadd.f32 0.0, %v566
        %v568 = vpop.f32.mrf.mxu0
        %v569 = vpop.f32.mrf.mxu0
        %v570 = vadd.f32 0.0, %v569
        %v571 = vpop.f32.mrf.mxu0
        %572 = vmatprep.mubr.bf16.mxu0 0
        %573 = vmatmul.mubr.bf16.gmra.mxu0 %v418
        %v574 = vpop.f32.mrf.mxu0
        %v575 = vadd.f32 0.0, %v574
        %v576 = vpop.f32.mrf.mxu0
        %v577 = vpop.f32.mrf.mxu0
        %v578 = vadd.f32 0.0, %v577
        %v579 = vpop.f32.mrf.mxu0
        %580 = vmatprep.mubr.bf16.mxu0 0
        %581 = vmatmul.mubr.bf16.gmra.mxu0 %v421
        %v582 = vpop.f32.mrf.mxu0
        %v583 = vadd.f32 0.0, %v582
        %v584 = vpop.f32.mrf.mxu0
        %v585 = vpop.f32.mrf.mxu0
        %v586 = vadd.f32 0.0, %v585
        %v587 = vpop.f32.mrf.mxu0
        %588 = vmatprep.mubr.bf16.mxu0 0
        %589 = vmatmul.mubr.bf16.gmra.mxu0 %v424
        %v590 = vpop.f32.mrf.mxu0
        %v591 = vadd.f32 0.0, %v590
        %v592 = vpop.f32.mrf.mxu0
        %v593 = vpop.f32.mrf.mxu0
        %v594 = vadd.f32 0.0, %v593
        %v595 = vpop.f32.mrf.mxu0
        %596 = vmatprep.mubr.bf16.mxu0 0
        %597 = vmatmul.mubr.bf16.gmra.mxu0 %v427
        %v598 = vpop.f32.mrf.mxu0
        %v599 = vadd.f32 0.0, %v598
        %v600 = vpop.f32.mrf.mxu0
        %v601 = vpop.f32.mrf.mxu0
        %v602 = vadd.f32 0.0, %v601
        %v603 = vpop.f32.mrf.mxu0
        %604 = vmatprep.mubr.bf16.mxu0 0
        %605 = vmatmul.mubr.bf16.gmra.mxu0 %v430
        %v606 = vpop.f32.mrf.mxu0
        %v607 = vadd.f32 0.0, %v606
        %v608 = vpop.f32.mrf.mxu0
        %v609 = vpop.f32.mrf.mxu0
        %v610 = vadd.f32 0.0, %v609
        %v611 = vpop.f32.mrf.mxu0
        %612 = vdwg.mxu0
        %v616 = vunpack.c.l.b16 %v196
        %v617 = vunpack.c.l.b16 %v197
        %v618 = vunpack.c.l.b16 %v198
        %v619 = vpack.c.b16 %v617, %v616
        %v620 = vpack.c.b16 %v279, %v618
        %v623 = vunpack.c.l.b16 %v232
        %v624 = vunpack.c.l.b16 %v233
        %v625 = vpack.c.b16 %v624, %v623
        %v627 = vsel %vm377, %v619, 0
        %v630 = vsel %vm377, %v620, 0
        %v633 = vsel %vm377, %v316, 0
        %v636 = vsel %vm377, %v317, 0
        %v639 = vsel %vm377, %v318, 0
        %v642 = vsel %vm377, %v319, 0
        %v645 = vsel %vm377, %v320, 0
        %v648 = vsel %vm377, %v321, 0
        %v651 = vsel %vm377, %v322, 0
        %v654 = vsel %vm377, %v323, 0
        %v657 = vsel %vm377, %v324, 0
        %v660 = vsel %vm377, %v325, 0
        %v663 = vsel %vm377, %v326, 0
        %v666 = vsel %vm377, %v327, 0
        %v669 = vsel %vm377, %v328, 0
        %v672 = vsel %vm377, %v329, 0
        %v675 = vsel %vm377, %v330, 0
        %v678 = vsel %vm377, %v331, 0
        %v681 = vsel %vm432, %v625, 0
        %683 = vmatprep.subr.bf16.mxu0 0
        %684 = vmatpush1.bf16.msra.mxu0 0
        %685 = vmatprep.subr.bf16.mxu0 0
        %686 = vmatpush1.bf16.msra.mxu0 0
        %687 = vmatprep.subr.bf16.mxu0 0
        %688 = vmatpush1.bf16.msra.mxu0 0
        %689 = vmatprep.subr.bf16.mxu0 0
        %690 = vmatpush1.bf16.msra.mxu0 0
        %691 = vmatprep.subr.bf16.mxu0 0
        %692 = vmatpush1.bf16.msra.mxu0 0
        %693 = vmatprep.subr.bf16.mxu0 0
        %694 = vmatpush1.bf16.msra.mxu0 0
        %695 = vmatprep.subr.bf16.mxu0 0
        %696 = vmatpush1.bf16.msra.mxu0 0
        %697 = vmatprep.subr.bf16.mxu0 0
        %698 = vmatpush1.bf16.msra.mxu0 %v681
        %699 = vmatprep.subr.bf16.mxu0 0
        %700 = vmatpush2.bf16.msra.mxu0 0
        %701 = vmatprep.subr.bf16.mxu0 0
        %702 = vmatpush2.bf16.msra.mxu0 0
        %703 = vmatprep.subr.bf16.mxu0 0
        %704 = vmatpush2.bf16.msra.mxu0 0
        %705 = vmatprep.subr.bf16.mxu0 0
        %706 = vmatpush2.bf16.msra.mxu0 0
        %707 = vmatprep.subr.bf16.mxu0 0
        %708 = vmatpush2.bf16.msra.mxu0 0
        %709 = vmatprep.subr.bf16.mxu0 0
        %710 = vmatpush2.bf16.msra.mxu0 0
        %711 = vmatprep.subr.bf16.mxu0 0
        %712 = vmatpush2.bf16.msra.mxu0 0
        %713 = vmatprep.subr.bf16.mxu0 0
        %714 = vmatpush2.bf16.msra.mxu0 0
        %715 = vmatprep.mubr.bf16.mxu0 0
        %716 = vmatmul.mubr.bf16.gmra.mxu0 %v627
        %v717 = vpop.f32.mrf.mxu0
        %v718 = vadd.f32 %v471, %v717
        %v719 = vpop.f32.mrf.mxu0
        %v720 = vpop.f32.mrf.mxu0
        %v721 = vadd.f32 %v474, %v720
        %v722 = vpop.f32.mrf.mxu0
        %723 = vmatprep.mubr.bf16.mxu0 0
        %724 = vmatmul.mubr.bf16.gmra.mxu0 %v630
        %v725 = vpop.f32.mrf.mxu0
        %v726 = vadd.f32 %v479, %v725
        %v727 = vpop.f32.mrf.mxu0
        %v728 = vpop.f32.mrf.mxu0
        %v729 = vadd.f32 %v482, %v728
        %v730 = vpop.f32.mrf.mxu0
        %731 = vmatprep.mubr.bf16.mxu0 0
        %732 = vmatmul.mubr.bf16.gmra.mxu0 %v633
        %v733 = vpop.f32.mrf.mxu0
        %v734 = vadd.f32 %v487, %v733
        %v735 = vpop.f32.mrf.mxu0
        %v736 = vpop.f32.mrf.mxu0
        %v737 = vadd.f32 %v490, %v736
        %v738 = vpop.f32.mrf.mxu0
        %739 = vmatprep.mubr.bf16.mxu0 0
        %740 = vmatmul.mubr.bf16.gmra.mxu0 %v636
        %v741 = vpop.f32.mrf.mxu0
        %v742 = vadd.f32 %v495, %v741
        %v743 = vpop.f32.mrf.mxu0
        %v744 = vpop.f32.mrf.mxu0
        %v745 = vadd.f32 %v498, %v744
        %v746 = vpop.f32.mrf.mxu0
        %747 = vmatprep.mubr.bf16.mxu0 0
        %748 = vmatmul.mubr.bf16.gmra.mxu0 %v639
        %v749 = vpop.f32.mrf.mxu0
        %v750 = vadd.f32 %v503, %v749
        %v751 = vpop.f32.mrf.mxu0
        %v752 = vpop.f32.mrf.mxu0
        %v753 = vadd.f32 %v506, %v752
        %v754 = vpop.f32.mrf.mxu0
        %755 = vmatprep.mubr.bf16.mxu0 0
        %756 = vmatmul.mubr.bf16.gmra.mxu0 %v642
        %v757 = vpop.f32.mrf.mxu0
        %v758 = vadd.f32 %v511, %v757
        %v759 = vpop.f32.mrf.mxu0
        %v760 = vpop.f32.mrf.mxu0
        %v761 = vadd.f32 %v514, %v760
        %v762 = vpop.f32.mrf.mxu0
        %763 = vmatprep.mubr.bf16.mxu0 0
        %764 = vmatmul.mubr.bf16.gmra.mxu0 %v645
        %v765 = vpop.f32.mrf.mxu0
        %v766 = vadd.f32 %v519, %v765
        %v767 = vpop.f32.mrf.mxu0
        %v768 = vpop.f32.mrf.mxu0
        %v769 = vadd.f32 %v522, %v768
        %v770 = vpop.f32.mrf.mxu0
        %771 = vmatprep.mubr.bf16.mxu0 0
        %772 = vmatmul.mubr.bf16.gmra.mxu0 %v648
        %v773 = vpop.f32.mrf.mxu0
        %v774 = vadd.f32 %v527, %v773
        %v775 = vpop.f32.mrf.mxu0
        %v776 = vpop.f32.mrf.mxu0
        %v777 = vadd.f32 %v530, %v776
        %v778 = vpop.f32.mrf.mxu0
        %779 = vmatprep.mubr.bf16.mxu0 0
        %780 = vmatmul.mubr.bf16.gmra.mxu0 %v651
        %v781 = vpop.f32.mrf.mxu0
        %v782 = vadd.f32 %v535, %v781
        %v783 = vpop.f32.mrf.mxu0
        %v784 = vpop.f32.mrf.mxu0
        %v785 = vadd.f32 %v538, %v784
        %v786 = vpop.f32.mrf.mxu0
        %787 = vmatprep.mubr.bf16.mxu0 0
        %788 = vmatmul.mubr.bf16.gmra.mxu0 %v654
        %v789 = vpop.f32.mrf.mxu0
        %v790 = vadd.f32 %v543, %v789
        %v791 = vpop.f32.mrf.mxu0
        %v792 = vpop.f32.mrf.mxu0
        %v793 = vadd.f32 %v546, %v792
        %v794 = vpop.f32.mrf.mxu0
        %795 = vmatprep.mubr.bf16.mxu0 0
        %796 = vmatmul.mubr.bf16.gmra.mxu0 %v657
        %v797 = vpop.f32.mrf.mxu0
        %v798 = vadd.f32 %v551, %v797
        %v799 = vpop.f32.mrf.mxu0
        %v800 = vpop.f32.mrf.mxu0
        %v801 = vadd.f32 %v554, %v800
        %v802 = vpop.f32.mrf.mxu0
        %803 = vmatprep.mubr.bf16.mxu0 0
        %804 = vmatmul.mubr.bf16.gmra.mxu0 %v660
        %v805 = vpop.f32.mrf.mxu0
        %v806 = vadd.f32 %v559, %v805
        %v807 = vpop.f32.mrf.mxu0
        %v808 = vpop.f32.mrf.mxu0
        %v809 = vadd.f32 %v562, %v808
        %v810 = vpop.f32.mrf.mxu0
        %811 = vmatprep.mubr.bf16.mxu0 0
        %812 = vmatmul.mubr.bf16.gmra.mxu0 %v663
        %v813 = vpop.f32.mrf.mxu0
        %v814 = vadd.f32 %v567, %v813
        %v815 = vpop.f32.mrf.mxu0
        %v816 = vpop.f32.mrf.mxu0
        %v817 = vadd.f32 %v570, %v816
        %v818 = vpop.f32.mrf.mxu0
        %819 = vmatprep.mubr.bf16.mxu0 0
        %820 = vmatmul.mubr.bf16.gmra.mxu0 %v666
        %v821 = vpop.f32.mrf.mxu0
        %v822 = vadd.f32 %v575, %v821
        %v823 = vpop.f32.mrf.mxu0
        %v824 = vpop.f32.mrf.mxu0
        %v825 = vadd.f32 %v578, %v824
        %v826 = vpop.f32.mrf.mxu0
        %827 = vmatprep.mubr.bf16.mxu0 0
        %828 = vmatmul.mubr.bf16.gmra.mxu0 %v669
        %v829 = vpop.f32.mrf.mxu0
        %v830 = vadd.f32 %v583, %v829
        %v831 = vpop.f32.mrf.mxu0
        %v832 = vpop.f32.mrf.mxu0
        %v833 = vadd.f32 %v586, %v832
        %v834 = vpop.f32.mrf.mxu0
        %835 = vmatprep.mubr.bf16.mxu0 0
        %836 = vmatmul.mubr.bf16.gmra.mxu0 %v672
        %v837 = vpop.f32.mrf.mxu0
        %v838 = vadd.f32 %v591, %v837
        %v839 = vpop.f32.mrf.mxu0
        %v840 = vpop.f32.mrf.mxu0
        %v841 = vadd.f32 %v594, %v840
        %v842 = vpop.f32.mrf.mxu0
        %843 = vmatprep.mubr.bf16.mxu0 0
        %844 = vmatmul.mubr.bf16.gmra.mxu0 %v675
        %v845 = vpop.f32.mrf.mxu0
        %v846 = vadd.f32 %v599, %v845
        %v847 = vpop.f32.mrf.mxu0
        %v848 = vpop.f32.mrf.mxu0
        %v849 = vadd.f32 %v602, %v848
        %v850 = vpop.f32.mrf.mxu0
        %851 = vmatprep.mubr.bf16.mxu0 0
        %852 = vmatmul.mubr.bf16.gmra.mxu0 %v678
        %v853 = vpop.f32.mrf.mxu0
        %v854 = vadd.f32 %v607, %v853
        %v855 = vpop.f32.mrf.mxu0
        %v856 = vpop.f32.mrf.mxu0
        %v857 = vadd.f32 %v610, %v856
        %v858 = vpop.f32.mrf.mxu0
        %859 = vdwg.mxu0
        %v860 = vld [vmem:[%s194 + $0x10] sm:$0xc]
        %v861 = vld [vmem:[%s194 + $0x14] sm:$0xf]
        %v862 = vld [vmem:[%s194 + $0x18] sm:$0xf]
        %v863 = vld [vmem:[%s194 + $0x1c] sm:$0xf]
        %v864 = vld [vmem:[%s194 + $0x20] sm:$0xf]
        %v865 = vld [vmem:[%s194 + $0x24] sm:$0xf]
        %v866 = vld [vmem:[%s194 + $0x28] sm:$0xf]
        %v867 = vld [vmem:[%s194 + $0x2c] sm:$0xf]
        %v868 = vld [vmem:[%s194 + $0x30] sm:$0xf]
        %v869 = vld [vmem:[%s194 + $0x34] sm:$0xf]
        %v870 = vld [vmem:[%s194 + $0x38] sm:$0xf]
        %v871 = vld [vmem:[%s194 + $0x3c] sm:$0xf]
        %v872 = vld [vmem:[%s194 + $0x40] sm:$0xf]
        %v873 = vld [vmem:[%s194 + $0x44] sm:$0xf]
        %v874 = vld [vmem:[%s194 + $0x48] sm:$0xf]
        %v875 = vld [vmem:[%s194 + $0x4c] sm:$0xf]
        %v876 = vld [vmem:[%s194 + $0x50] sm:$0xf]
        %v877 = vld [vmem:[%s194 + $0x54] sm:$0xf]
        %v878 = vld [vmem:[%s194 + $0x58] sm:$0xf]
        %v879 = vld [vmem:[%s194 + $0x5c] sm:$0xf]
        %v880 = vld [vmem:[%s194 + $0x60] sm:$0xf]
        %v881 = vld [vmem:[%s194 + $0x64] sm:$0xf]
        %v882 = vld [vmem:[%s194 + $0x68] sm:$0xf]
        %v883 = vld [vmem:[%s194 + $0x6c] sm:$0xf]
        %v884 = vld [vmem:[%s194 + $0x70] sm:$0xf]
        %v885 = vld [vmem:[%s194 + $0x74] sm:$0xf]
        %v886 = vld [vmem:[%s194 + $0x78] sm:$0xf]
        %v887 = vld [vmem:[%s194 + $0x7c] sm:$0xf]
        %v888 = vld [vmem:[%s194 + $0x80] sm:$0xf]
        %v889 = vld [vmem:[%s194 + $0x84] sm:$0xf]
        %v890 = vld [vmem:[%s194 + $0x88] sm:$0xf]
        %v891 = vld [vmem:[%s194 + $0x8c] sm:$0xf]
        %v892 = vld [vmem:[%s194 + $0x90] sm:$0xf]
        %v893 = vld [vmem:[%s194 + $0x94] sm:$0xf]
        %v894 = vld [vmem:[%s194 + $0x98] sm:$0xf]
        %v895 = vld [vmem:[%s194 + $0x9c] sm:$0xf]
        %v896 = vld [vmem:[%s194 + $0xa0] sm:$0x3]
        %s897 = scalar_lea.vmem %s1, 16
        %v898 = vld [vmem:[%s897] sm:$0xf]
        %v899 = vld [vmem:[%s897 + $0x4] sm:$0x3]
        %v937 = vunpack.c.l.b16 %v860
        %v938 = vunpack.c.l.b16 %v861
        %v939 = vunpack.c.l.b16 %v862
        %v940 = vunpack.c.l.b16 %v863
        %v941 = vunpack.c.l.b16 %v864
        %v942 = vunpack.c.l.b16 %v865
        %v943 = vunpack.c.l.b16 %v866
        %v944 = vunpack.c.l.b16 %v867
        %v945 = vunpack.c.l.b16 %v868
        %v946 = vunpack.c.l.b16 %v869
        %v947 = vunpack.c.l.b16 %v870
        %v948 = vunpack.c.l.b16 %v871
        %v949 = vunpack.c.l.b16 %v872
        %v950 = vunpack.c.l.b16 %v873
        %v951 = vunpack.c.l.b16 %v874
        %v952 = vunpack.c.l.b16 %v875
        %v953 = vunpack.c.l.b16 %v876
        %v954 = vunpack.c.l.b16 %v877
        %v955 = vunpack.c.l.b16 %v878
        %v956 = vunpack.c.l.b16 %v879
        %v957 = vunpack.c.l.b16 %v880
        %v958 = vunpack.c.l.b16 %v881
        %v959 = vunpack.c.l.b16 %v882
        %v960 = vunpack.c.l.b16 %v883
        %v961 = vunpack.c.l.b16 %v884
        %v962 = vunpack.c.l.b16 %v885
        %v963 = vunpack.c.l.b16 %v886
        %v964 = vunpack.c.l.b16 %v887
        %v965 = vunpack.c.l.b16 %v888
        %v966 = vunpack.c.l.b16 %v889
        %v967 = vunpack.c.l.b16 %v890
        %v968 = vunpack.c.l.b16 %v891
        %v969 = vunpack.c.l.b16 %v892
        %v970 = vunpack.c.l.b16 %v893
        %v971 = vunpack.c.l.b16 %v894
        %v972 = vunpack.c.l.b16 %v895
        %v973 = vunpack.c.l.b16 %v896
        %v974 = vpack.c.b16 %v938, %v937
        %v975 = vpack.c.b16 %v940, %v939
        %v976 = vpack.c.b16 %v942, %v941
        %v977 = vpack.c.b16 %v944, %v943
        %v978 = vpack.c.b16 %v946, %v945
        %v979 = vpack.c.b16 %v948, %v947
        %v980 = vpack.c.b16 %v950, %v949
        %v981 = vpack.c.b16 %v952, %v951
        %v982 = vpack.c.b16 %v954, %v953
        %v983 = vpack.c.b16 %v956, %v955
        %v984 = vpack.c.b16 %v958, %v957
        %v985 = vpack.c.b16 %v960, %v959
        %v986 = vpack.c.b16 %v962, %v961
        %v987 = vpack.c.b16 %v964, %v963
        %v988 = vpack.c.b16 %v966, %v965
        %v989 = vpack.c.b16 %v968, %v967
        %v990 = vpack.c.b16 %v970, %v969
        %v991 = vpack.c.b16 %v972, %v971
        %v992 = vpack.c.b16 %v973, %v973
        %vm993 = vcmask 1045504
        %v994 = vrot.slane %v974, 2
        %v995 = vrot.slane %v975, 2
        %v996 = vsel %vm993, %v994, %v995
        %v997 = vrot.slane %v976, 2
        %v998 = vsel %vm993, %v995, %v997
        %v999 = vrot.slane %v977, 2
        %v1000 = vsel %vm993, %v997, %v999
        %v1001 = vrot.slane %v978, 2
        %v1002 = vsel %vm993, %v999, %v1001
        %v1003 = vrot.slane %v979, 2
        %v1004 = vsel %vm993, %v1001, %v1003
        %v1005 = vrot.slane %v980, 2
        %v1006 = vsel %vm993, %v1003, %v1005
        %v1007 = vrot.slane %v981, 2
        %v1008 = vsel %vm993, %v1005, %v1007
        %v1009 = vrot.slane %v982, 2
        %v1010 = vsel %vm993, %v1007, %v1009
        %v1011 = vrot.slane %v983, 2
        %v1012 = vsel %vm993, %v1009, %v1011
        %v1013 = vrot.slane %v984, 2
        %v1014 = vsel %vm993, %v1011, %v1013
        %v1015 = vrot.slane %v985, 2
        %v1016 = vsel %vm993, %v1013, %v1015
        %v1017 = vrot.slane %v986, 2
        %v1018 = vsel %vm993, %v1015, %v1017
        %v1019 = vrot.slane %v987, 2
        %v1020 = vsel %vm993, %v1017, %v1019
        %v1021 = vrot.slane %v988, 2
        %v1022 = vsel %vm993, %v1019, %v1021
        %v1023 = vrot.slane %v989, 2
        %v1024 = vsel %vm993, %v1021, %v1023
        %v1025 = vrot.slane %v990, 2
        %v1026 = vsel %vm993, %v1023, %v1025
        %v1027 = vrot.slane %v991, 2
        %v1028 = vsel %vm993, %v1025, %v1027
        %v1029 = vrot.slane %v992, 2
        %v1030 = vsel %vm993, %v1027, %v1029
        %v1033 = vunpack.c.l.b16 %v898
        %v1034 = vunpack.c.l.b16 %v899
        %v1035 = vpack.c.b16 %v1034, %v1033
        %v1037 = vsel %vm377, %v996, 0
        %v1040 = vsel %vm377, %v998, 0
        %v1043 = vsel %vm377, %v1000, 0
        %v1046 = vsel %vm377, %v1002, 0
        %v1049 = vsel %vm377, %v1004, 0
        %v1052 = vsel %vm377, %v1006, 0
        %v1055 = vsel %vm377, %v1008, 0
        %v1058 = vsel %vm377, %v1010, 0
        %v1061 = vsel %vm377, %v1012, 0
        %v1064 = vsel %vm377, %v1014, 0
        %v1067 = vsel %vm377, %v1016, 0
        %v1070 = vsel %vm377, %v1018, 0
        %v1073 = vsel %vm377, %v1020, 0
        %v1076 = vsel %vm377, %v1022, 0
        %v1079 = vsel %vm377, %v1024, 0
        %v1082 = vsel %vm377, %v1026, 0
        %v1085 = vsel %vm377, %v1028, 0
        %v1088 = vsel %vm377, %v1030, 0
        %v1091 = vsel %vm432, %v1035, 0
        %1093 = vmatprep.subr.bf16.mxu0 0
        %1094 = vmatpush1.bf16.msra.mxu0 0
        %1095 = vmatprep.subr.bf16.mxu0 0
        %1096 = vmatpush1.bf16.msra.mxu0 0
        %1097 = vmatprep.subr.bf16.mxu0 0
        %1098 = vmatpush1.bf16.msra.mxu0 0
        %1099 = vmatprep.subr.bf16.mxu0 0
        %1100 = vmatpush1.bf16.msra.mxu0 0
        %1101 = vmatprep.subr.bf16.mxu0 0
        %1102 = vmatpush1.bf16.msra.mxu0 0
        %1103 = vmatprep.subr.bf16.mxu0 0
        %1104 = vmatpush1.bf16.msra.mxu0 0
        %1105 = vmatprep.subr.bf16.mxu0 0
        %1106 = vmatpush1.bf16.msra.mxu0 0
        %1107 = vmatprep.subr.bf16.mxu0 0
        %1108 = vmatpush1.bf16.msra.mxu0 %v1091
        %1109 = vmatprep.subr.bf16.mxu0 0
        %1110 = vmatpush2.bf16.msra.mxu0 0
        %1111 = vmatprep.subr.bf16.mxu0 0
        %1112 = vmatpush2.bf16.msra.mxu0 0
        %1113 = vmatprep.subr.bf16.mxu0 0
        %1114 = vmatpush2.bf16.msra.mxu0 0
        %1115 = vmatprep.subr.bf16.mxu0 0
        %1116 = vmatpush2.bf16.msra.mxu0 0
        %1117 = vmatprep.subr.bf16.mxu0 0
        %1118 = vmatpush2.bf16.msra.mxu0 0
        %1119 = vmatprep.subr.bf16.mxu0 0
        %1120 = vmatpush2.bf16.msra.mxu0 0
        %1121 = vmatprep.subr.bf16.mxu0 0
        %1122 = vmatpush2.bf16.msra.mxu0 0
        %1123 = vmatprep.subr.bf16.mxu0 0
        %1124 = vmatpush2.bf16.msra.mxu0 0
        %1125 = vmatprep.mubr.bf16.mxu0 0
        %1126 = vmatmul.mubr.bf16.gmra.mxu0 %v1037
        %v1127 = vpop.f32.mrf.mxu0
        %v1128 = vadd.f32 0.0, %v1127
        %v1129 = vpop.f32.mrf.mxu0
        %v1130 = vpop.f32.mrf.mxu0
        %v1131 = vadd.f32 0.0, %v1130
        %v1132 = vpop.f32.mrf.mxu0
        %1133 = vmatprep.mubr.bf16.mxu0 0
        %1134 = vmatmul.mubr.bf16.gmra.mxu0 %v1040
        %v1135 = vpop.f32.mrf.mxu0
        %v1136 = vadd.f32 0.0, %v1135
        %v1137 = vpop.f32.mrf.mxu0
        %v1138 = vpop.f32.mrf.mxu0
        %v1139 = vadd.f32 0.0, %v1138
        %v1140 = vpop.f32.mrf.mxu0
        %1141 = vmatprep.mubr.bf16.mxu0 0
        %1142 = vmatmul.mubr.bf16.gmra.mxu0 %v1043
        %v1143 = vpop.f32.mrf.mxu0
        %v1144 = vadd.f32 0.0, %v1143
        %v1145 = vpop.f32.mrf.mxu0
        %v1146 = vpop.f32.mrf.mxu0
        %v1147 = vadd.f32 0.0, %v1146
        %v1148 = vpop.f32.mrf.mxu0
        %1149 = vmatprep.mubr.bf16.mxu0 0
        %1150 = vmatmul.mubr.bf16.gmra.mxu0 %v1046
        %v1151 = vpop.f32.mrf.mxu0
        %v1152 = vadd.f32 0.0, %v1151
        %v1153 = vpop.f32.mrf.mxu0
        %v1154 = vpop.f32.mrf.mxu0
        %v1155 = vadd.f32 0.0, %v1154
        %v1156 = vpop.f32.mrf.mxu0
        %1157 = vmatprep.mubr.bf16.mxu0 0
        %1158 = vmatmul.mubr.bf16.gmra.mxu0 %v1049
        %v1159 = vpop.f32.mrf.mxu0
        %v1160 = vadd.f32 0.0, %v1159
        %v1161 = vpop.f32.mrf.mxu0
        %v1162 = vpop.f32.mrf.mxu0
        %v1163 = vadd.f32 0.0, %v1162
        %v1164 = vpop.f32.mrf.mxu0
        %1165 = vmatprep.mubr.bf16.mxu0 0
        %1166 = vmatmul.mubr.bf16.gmra.mxu0 %v1052
        %v1167 = vpop.f32.mrf.mxu0
        %v1168 = vadd.f32 0.0, %v1167
        %v1169 = vpop.f32.mrf.mxu0
        %v1170 = vpop.f32.mrf.mxu0
        %v1171 = vadd.f32 0.0, %v1170
        %v1172 = vpop.f32.mrf.mxu0
        %1173 = vmatprep.mubr.bf16.mxu0 0
        %1174 = vmatmul.mubr.bf16.gmra.mxu0 %v1055
        %v1175 = vpop.f32.mrf.mxu0
        %v1176 = vadd.f32 0.0, %v1175
        %v1177 = vpop.f32.mrf.mxu0
        %v1178 = vpop.f32.mrf.mxu0
        %v1179 = vadd.f32 0.0, %v1178
        %v1180 = vpop.f32.mrf.mxu0
        %1181 = vmatprep.mubr.bf16.mxu0 0
        %1182 = vmatmul.mubr.bf16.gmra.mxu0 %v1058
        %v1183 = vpop.f32.mrf.mxu0
        %v1184 = vadd.f32 0.0, %v1183
        %v1185 = vpop.f32.mrf.mxu0
        %v1186 = vpop.f32.mrf.mxu0
        %v1187 = vadd.f32 0.0, %v1186
        %v1188 = vpop.f32.mrf.mxu0
        %1189 = vmatprep.mubr.bf16.mxu0 0
        %1190 = vmatmul.mubr.bf16.gmra.mxu0 %v1061
        %v1191 = vpop.f32.mrf.mxu0
        %v1192 = vadd.f32 0.0, %v1191
        %v1193 = vpop.f32.mrf.mxu0
        %v1194 = vpop.f32.mrf.mxu0
        %v1195 = vadd.f32 0.0, %v1194
        %v1196 = vpop.f32.mrf.mxu0
        %1197 = vmatprep.mubr.bf16.mxu0 0
        %1198 = vmatmul.mubr.bf16.gmra.mxu0 %v1064
        %v1199 = vpop.f32.mrf.mxu0
        %v1200 = vadd.f32 0.0, %v1199
        %v1201 = vpop.f32.mrf.mxu0
        %v1202 = vpop.f32.mrf.mxu0
        %v1203 = vadd.f32 0.0, %v1202
        %v1204 = vpop.f32.mrf.mxu0
        %1205 = vmatprep.mubr.bf16.mxu0 0
        %1206 = vmatmul.mubr.bf16.gmra.mxu0 %v1067
        %v1207 = vpop.f32.mrf.mxu0
        %v1208 = vadd.f32 0.0, %v1207
        %v1209 = vpop.f32.mrf.mxu0
        %v1210 = vpop.f32.mrf.mxu0
        %v1211 = vadd.f32 0.0, %v1210
        %v1212 = vpop.f32.mrf.mxu0
        %1213 = vmatprep.mubr.bf16.mxu0 0
        %1214 = vmatmul.mubr.bf16.gmra.mxu0 %v1070
        %v1215 = vpop.f32.mrf.mxu0
        %v1216 = vadd.f32 0.0, %v1215
        %v1217 = vpop.f32.mrf.mxu0
        %v1218 = vpop.f32.mrf.mxu0
        %v1219 = vadd.f32 0.0, %v1218
        %v1220 = vpop.f32.mrf.mxu0
        %1221 = vmatprep.mubr.bf16.mxu0 0
        %1222 = vmatmul.mubr.bf16.gmra.mxu0 %v1073
        %v1223 = vpop.f32.mrf.mxu0
        %v1224 = vadd.f32 0.0, %v1223
        %v1225 = vpop.f32.mrf.mxu0
        %v1226 = vpop.f32.mrf.mxu0
        %v1227 = vadd.f32 0.0, %v1226
        %v1228 = vpop.f32.mrf.mxu0
        %1229 = vmatprep.mubr.bf16.mxu0 0
        %1230 = vmatmul.mubr.bf16.gmra.mxu0 %v1076
        %v1231 = vpop.f32.mrf.mxu0
        %v1232 = vadd.f32 0.0, %v1231
        %v1233 = vpop.f32.mrf.mxu0
        %v1234 = vpop.f32.mrf.mxu0
        %v1235 = vadd.f32 0.0, %v1234
        %v1236 = vpop.f32.mrf.mxu0
        %1237 = vmatprep.mubr.bf16.mxu0 0
        %1238 = vmatmul.mubr.bf16.gmra.mxu0 %v1079
        %v1239 = vpop.f32.mrf.mxu0
        %v1240 = vadd.f32 0.0, %v1239
        %v1241 = vpop.f32.mrf.mxu0
        %v1242 = vpop.f32.mrf.mxu0
        %v1243 = vadd.f32 0.0, %v1242
        %v1244 = vpop.f32.mrf.mxu0
        %1245 = vmatprep.mubr.bf16.mxu0 0
        %1246 = vmatmul.mubr.bf16.gmra.mxu0 %v1082
        %v1247 = vpop.f32.mrf.mxu0
        %v1248 = vadd.f32 0.0, %v1247
        %v1249 = vpop.f32.mrf.mxu0
        %v1250 = vpop.f32.mrf.mxu0
        %v1251 = vadd.f32 0.0, %v1250
        %v1252 = vpop.f32.mrf.mxu0
        %1253 = vmatprep.mubr.bf16.mxu0 0
        %1254 = vmatmul.mubr.bf16.gmra.mxu0 %v1085
        %v1255 = vpop.f32.mrf.mxu0
        %v1256 = vadd.f32 0.0, %v1255
        %v1257 = vpop.f32.mrf.mxu0
        %v1258 = vpop.f32.mrf.mxu0
        %v1259 = vadd.f32 0.0, %v1258
        %v1260 = vpop.f32.mrf.mxu0
        %1261 = vmatprep.mubr.bf16.mxu0 0
        %1262 = vmatmul.mubr.bf16.gmra.mxu0 %v1088
        %v1263 = vpop.f32.mrf.mxu0
        %v1264 = vadd.f32 0.0, %v1263
        %v1265 = vpop.f32.mrf.mxu0
        %v1266 = vpop.f32.mrf.mxu0
        %v1267 = vadd.f32 0.0, %v1266
        %v1268 = vpop.f32.mrf.mxu0
        %1269 = vdwg.mxu0
        %v1270 = vadd.f32 %v718, %v1128
        %v1271 = vadd.f32 %v721, %v1131
        %v1272 = vadd.f32 %v726, %v1136
        %v1273 = vadd.f32 %v729, %v1139
        %v1274 = vadd.f32 %v734, %v1144
        %v1275 = vadd.f32 %v737, %v1147
        %v1276 = vadd.f32 %v742, %v1152
        %v1277 = vadd.f32 %v745, %v1155
        %v1278 = vadd.f32 %v750, %v1160
        %v1279 = vadd.f32 %v753, %v1163
        %v1280 = vadd.f32 %v758, %v1168
        %v1281 = vadd.f32 %v761, %v1171
        %v1282 = vadd.f32 %v766, %v1176
        %v1283 = vadd.f32 %v769, %v1179
        %v1284 = vadd.f32 %v774, %v1184
        %v1285 = vadd.f32 %v777, %v1187
        %v1286 = vadd.f32 %v782, %v1192
        %v1287 = vadd.f32 %v785, %v1195
        %v1288 = vadd.f32 %v790, %v1200
        %v1289 = vadd.f32 %v793, %v1203
        %v1290 = vadd.f32 %v798, %v1208
        %v1291 = vadd.f32 %v801, %v1211
        %v1292 = vadd.f32 %v806, %v1216
        %v1293 = vadd.f32 %v809, %v1219
        %v1294 = vadd.f32 %v814, %v1224
        %v1295 = vadd.f32 %v817, %v1227
        %v1296 = vadd.f32 %v822, %v1232
        %v1297 = vadd.f32 %v825, %v1235
        %v1298 = vadd.f32 %v830, %v1240
        %v1299 = vadd.f32 %v833, %v1243
        %v1300 = vadd.f32 %v838, %v1248
        %v1301 = vadd.f32 %v841, %v1251
        %v1302 = vadd.f32 %v846, %v1256
        %v1303 = vadd.f32 %v849, %v1259
        %v1304 = vadd.f32 %v854, %v1264
        %v1305 = vadd.f32 %v857, %v1267
        %v1306 = vld [vmem:[%s2] sm:$0x1]
        %v1308 = vlaneseq
        %v1309 = vshrl.u32 %v1308, 7
        %v1310 = vsub.s32 0, %v1309
        %v1311 = vrot.slane %v1306, %v1310
        %v1313 = vadd.f32 %v1270, %v1311
        %v1314 = vadd.f32 %v1271, %v1311
        %v1315 = vadd.f32 %v1272, %v1311
        %v1316 = vadd.f32 %v1273, %v1311
        %v1317 = vadd.f32 %v1274, %v1311
        %v1318 = vadd.f32 %v1275, %v1311
        %v1319 = vadd.f32 %v1276, %v1311
        %v1320 = vadd.f32 %v1277, %v1311
        %v1321 = vadd.f32 %v1278, %v1311
        %v1322 = vadd.f32 %v1279, %v1311
        %v1323 = vadd.f32 %v1280, %v1311
        %v1324 = vadd.f32 %v1281, %v1311
        %v1325 = vadd.f32 %v1282, %v1311
        %v1326 = vadd.f32 %v1283, %v1311
        %v1327 = vadd.f32 %v1284, %v1311
        %v1328 = vadd.f32 %v1285, %v1311
        %v1329 = vadd.f32 %v1286, %v1311
        %v1330 = vadd.f32 %v1287, %v1311
        %v1331 = vadd.f32 %v1288, %v1311
        %v1332 = vadd.f32 %v1289, %v1311
        %v1333 = vadd.f32 %v1290, %v1311
        %v1334 = vadd.f32 %v1291, %v1311
        %v1335 = vadd.f32 %v1292, %v1311
        %v1336 = vadd.f32 %v1293, %v1311
        %v1337 = vadd.f32 %v1294, %v1311
        %v1338 = vadd.f32 %v1295, %v1311
        %v1339 = vadd.f32 %v1296, %v1311
        %v1340 = vadd.f32 %v1297, %v1311
        %v1341 = vadd.f32 %v1298, %v1311
        %v1342 = vadd.f32 %v1299, %v1311
        %v1343 = vadd.f32 %v1300, %v1311
        %v1344 = vadd.f32 %v1301, %v1311
        %v1345 = vadd.f32 %v1302, %v1311
        %v1346 = vadd.f32 %v1303, %v1311
        %v1347 = vadd.f32 %v1304, %v1311
        %v1348 = vadd.f32 %v1305, %v1311
        %v1349 = vmax.f32 %v1313, 0.0
        %v1350 = vmax.f32 %v1314, 0.0
        %v1351 = vmax.f32 %v1315, 0.0
        %v1352 = vmax.f32 %v1316, 0.0
        %v1353 = vmax.f32 %v1317, 0.0
        %v1354 = vmax.f32 %v1318, 0.0
        %v1355 = vmax.f32 %v1319, 0.0
        %v1356 = vmax.f32 %v1320, 0.0
        %v1357 = vmax.f32 %v1321, 0.0
        %v1358 = vmax.f32 %v1322, 0.0
        %v1359 = vmax.f32 %v1323, 0.0
        %v1360 = vmax.f32 %v1324, 0.0
        %v1361 = vmax.f32 %v1325, 0.0
        %v1362 = vmax.f32 %v1326, 0.0
        %v1363 = vmax.f32 %v1327, 0.0
        %v1364 = vmax.f32 %v1328, 0.0
        %v1365 = vmax.f32 %v1329, 0.0
        %v1366 = vmax.f32 %v1330, 0.0
        %v1367 = vmax.f32 %v1331, 0.0
        %v1368 = vmax.f32 %v1332, 0.0
        %v1369 = vmax.f32 %v1333, 0.0
        %v1370 = vmax.f32 %v1334, 0.0
        %v1371 = vmax.f32 %v1335, 0.0
        %v1372 = vmax.f32 %v1336, 0.0
        %v1373 = vmax.f32 %v1337, 0.0
        %v1374 = vmax.f32 %v1338, 0.0
        %v1375 = vmax.f32 %v1339, 0.0
        %v1376 = vmax.f32 %v1340, 0.0
        %v1377 = vmax.f32 %v1341, 0.0
        %v1378 = vmax.f32 %v1342, 0.0
        %v1379 = vmax.f32 %v1343, 0.0
        %v1380 = vmax.f32 %v1344, 0.0
        %v1381 = vmax.f32 %v1345, 0.0
        %v1382 = vmax.f32 %v1346, 0.0
        %v1383 = vmax.f32 %v1347, 0.0
        %v1384 = vmax.f32 %v1348, 0.0
        %v1385 = vld [vmem:[%s3] sm:$0x7]
        %v1386 = vpack.c.bf16 %v1350, %v1349
        %v1387 = vpack.c.bf16 %v1352, %v1351
        %v1388 = vpack.c.bf16 %v1354, %v1353
        %v1389 = vpack.c.bf16 %v1356, %v1355
        %v1390 = vpack.c.bf16 %v1358, %v1357
        %v1391 = vpack.c.bf16 %v1360, %v1359
        %v1392 = vpack.c.bf16 %v1362, %v1361
        %v1393 = vpack.c.bf16 %v1364, %v1363
        %v1394 = vpack.c.bf16 %v1366, %v1365
        %v1395 = vpack.c.bf16 %v1368, %v1367
        %v1396 = vpack.c.bf16 %v1370, %v1369
        %v1397 = vpack.c.bf16 %v1372, %v1371
        %v1398 = vpack.c.bf16 %v1374, %v1373
        %v1399 = vpack.c.bf16 %v1376, %v1375
        %v1400 = vpack.c.bf16 %v1378, %v1377
        %v1401 = vpack.c.bf16 %v1380, %v1379
        %v1402 = vpack.c.bf16 %v1382, %v1381
        %v1403 = vpack.c.bf16 %v1384, %v1383
        %v1406 = vunpack.c.l.s4 1966171168
        %v1407 = vunpack.c.0.s8 %v1406
        %v1408 = vlaneseq
        %v1409 = vshrl.u32 %v1408, 7
        %v1410 = vsub.s32 %v1407, %v1409
        %v1411 = vrot.slane %v1385, %v1410
        %v1412 = vcombine.high %v1411, %v1411
        %v1414 = vunpack.c.l.s4 1966171168
        %v1415 = vunpack.c.0.s8 %v1414
        %v1416 = vlaneseq
        %v1417 = vshrl.u32 %v1416, 7
        %v1418 = vsub.s32 %v1415, %v1417
        %v1419 = vrot.slane %v1411, %v1418
        %v1421 = vunpack.c.l.s4 1966171168
        %v1422 = vunpack.c.0.s8 %v1421
        %v1423 = vlaneseq
        %v1424 = vshrl.u32 %v1423, 7
        %v1425 = vsub.s32 %v1422, %v1424
        %v1426 = vrot.slane %v1412, %v1425
        %v1427 = vcombine.high %v1419, %v1419
        %vm1430 = vcmask 261120
        %v1432 = vsel %vm1430, %v1427, 0
        %1434 = vmatprep.subr.bf16.mxu0 0
        %1435 = vmatpush1.bf16.msra.mxu0 %v1393
        %1436 = vmatprep.subr.bf16.mxu0 0
        %1437 = vmatpush1.bf16.msra.mxu0 %v1392
        %1438 = vmatprep.subr.bf16.mxu0 0
        %1439 = vmatpush1.bf16.msra.mxu0 %v1391
        %1440 = vmatprep.subr.bf16.mxu0 0
        %1441 = vmatpush1.bf16.msra.mxu0 %v1390
        %1442 = vmatprep.subr.bf16.mxu0 0
        %1443 = vmatpush1.bf16.msra.mxu0 %v1389
        %1444 = vmatprep.subr.bf16.mxu0 0
        %1445 = vmatpush1.bf16.msra.mxu0 %v1388
        %1446 = vmatprep.subr.bf16.mxu0 0
        %1447 = vmatpush1.bf16.msra.mxu0 %v1387
        %1448 = vmatprep.subr.bf16.mxu0 0
        %1449 = vmatpush1.bf16.msra.mxu0 %v1386
        %1450 = vmatprep.subr.bf16.mxu0 0
        %1451 = vmatpush2.bf16.msra.mxu0 %v1401
        %1452 = vmatprep.subr.bf16.mxu0 0
        %1453 = vmatpush2.bf16.msra.mxu0 %v1400
        %1454 = vmatprep.subr.bf16.mxu0 0
        %1455 = vmatpush2.bf16.msra.mxu0 %v1399
        %1456 = vmatprep.subr.bf16.mxu0 0
        %1457 = vmatpush2.bf16.msra.mxu0 %v1398
        %1458 = vmatprep.subr.bf16.mxu0 0
        %1459 = vmatpush2.bf16.msra.mxu0 %v1397
        %1460 = vmatprep.subr.bf16.mxu0 0
        %1461 = vmatpush2.bf16.msra.mxu0 %v1396
        %1462 = vmatprep.subr.bf16.mxu0 0
        %1463 = vmatpush2.bf16.msra.mxu0 %v1395
        %1464 = vmatprep.subr.bf16.mxu0 0
        %1465 = vmatpush2.bf16.msra.mxu0 %v1394
        %1466 = vmatprep.mubr.bf16.mxu0 %v1426
        %1467 = vmatmul.mubr.bf16.gmra.mxu0 %v1419
        %v1468 = vpop.f32.mrf.mxu0
        %v1469 = vadd.f32 0.0, %v1468
        %v1470 = vpop.f32.mrf.mxu0
        %v1471 = vpop.f32.mrf.mxu0
        %v1472 = vpop.f32.mrf.mxu0
        %1473 = vdwg.mxu0
        %1474 = vmatprep.subr.bf16.mxu0 0
        %1475 = vmatpush1.bf16.msra.mxu0 0
        %1476 = vmatprep.subr.bf16.mxu0 0
        %1477 = vmatpush1.bf16.msra.mxu0 0
        %1478 = vmatprep.subr.bf16.mxu0 0
        %1479 = vmatpush1.bf16.msra.mxu0 0
        %1480 = vmatprep.subr.bf16.mxu0 0
        %1481 = vmatpush1.bf16.msra.mxu0 0
        %1482 = vmatprep.subr.bf16.mxu0 0
        %1483 = vmatpush1.bf16.msra.mxu0 0
        %1484 = vmatprep.subr.bf16.mxu0 0
        %1485 = vmatpush1.bf16.msra.mxu0 0
        %1486 = vmatprep.subr.bf16.mxu0 0
        %1487 = vmatpush1.bf16.msra.mxu0 %v1403
        %1488 = vmatprep.subr.bf16.mxu0 0
        %1489 = vmatpush1.bf16.msra.mxu0 %v1402
        %1490 = vmatprep.subr.bf16.mxu0 0
        %1491 = vmatpush2.bf16.msra.mxu0 0
        %1492 = vmatprep.subr.bf16.mxu0 0
        %1493 = vmatpush2.bf16.msra.mxu0 0
        %1494 = vmatprep.subr.bf16.mxu0 0
        %1495 = vmatpush2.bf16.msra.mxu0 0
        %1496 = vmatprep.subr.bf16.mxu0 0
        %1497 = vmatpush2.bf16.msra.mxu0 0
        %1498 = vmatprep.subr.bf16.mxu0 0
        %1499 = vmatpush2.bf16.msra.mxu0 0
        %1500 = vmatprep.subr.bf16.mxu0 0
        %1501 = vmatpush2.bf16.msra.mxu0 0
        %1502 = vmatprep.subr.bf16.mxu0 0
        %1503 = vmatpush2.bf16.msra.mxu0 0
        %1504 = vmatprep.subr.bf16.mxu0 0
        %1505 = vmatpush2.bf16.msra.mxu0 0
        %1506 = vmatprep.mubr.bf16.mxu0 0
        %1507 = vmatmul.mubr.bf16.gmra.mxu0 %v1432
        %v1508 = vpop.f32.mrf.mxu0
        %v1509 = vadd.f32 %v1469, %v1508
        %v1510 = vpop.f32.mrf.mxu0
        %v1511 = vpop.f32.mrf.mxu0
        %v1512 = vpop.f32.mrf.mxu0
        %1513 = vdwg.mxu0
        %1514 = vst [vmem:[%s189] sm:$0x1] %v1509
        %s1515 = sand.u32 %s115, 1
        %s1516 = scalar_lea.sflag [#allocation3], %s1515
        %s1517 = sand.u32 %s115, 1
        %s1518 = scalar_lea.vmem [#allocation2], %s1517
        // Predicated region
        $region37: #{tpu_custom_call.1} parent=35 // pred_check
          %p1519 = pneg %p125
        $region38: #{tpu_custom_call.1} parent=35 // pred_check_branch
          %1521 = sbr.rel (%p1519) target = $region40
        $region39: #{tpu_custom_call.1} parent=35 // pred_region
          %s1523 = ssub.s32 16, 16
          %1524 = vsyncadd %s1516, %s1523
          %s1525 = smul.addr %s18, 16
          %s1526 = scalar_lea.hbm %s4, %s1525
          %s1528 = sshll.u32 %s1518, 4
          %s1529 = int_to_ptr.vmem [resolvable:$true] %s1528
          %1531 = dma.vmem_to_hbm [thread:$0]  %s1529, 16, %s1526, %s1516
        $region40: #{tpu_custom_call.1} parent=35 // pred_fallthru
          _
      $region36: #{tpu_custom_call.1} parent=5 // pred_fallthru
        _
      %p1532 = scmp.le.s32.totalorder 2, %s13
      // Predicated region
      $region41: #{tpu_custom_call.1} parent=5 // pred_check
        %p1533 = pneg %p1532
      $region42: #{tpu_custom_call.1} parent=5 // pred_check_branch
        %1535 = sbr.rel (%p1533) target = $region44
      $region43: #{tpu_custom_call.1} parent=5 // pred_region
        %s1536 = ssub.s32 %s13, 2
        // Predicated region
        $region45: #{tpu_custom_call.1} parent=43 // pred_check
          %p1537 = pneg %p131
        $region46: #{tpu_custom_call.1} parent=43 // pred_check_branch
          %1539 = sbr.rel (%p1537) target = $region48
        $region47: #{tpu_custom_call.1} parent=43 // pred_region
          %s1540 = sand.u32 %s116, 1
          %s1541 = scalar_lea.sflag [#allocation3], %s1540
          %s1542 = sand.u32 %s116, 1
          %s1543 = scalar_lea.vmem [#allocation2], %s1542
          %1544 = dma.done %s1541, 16
        $region48: #{tpu_custom_call.1} parent=43 // pred_fallthru
          _
      $region44: #{tpu_custom_call.1} parent=5 // pred_fallthru
        _
    $region6: #{tpu_custom_call.1} parent=1 // loop_footer
      %s17 = sadd.s32 1, %s13
    $region7: #{tpu_custom_call.1} parent=1 // loop_footer_branch
      %12 = sbr.rel target = $region3
    $region8: #{tpu_custom_call.1} parent=1 // loop_exit
      _
    %1545 = vsyncpa [#allocation3], 1
    %s1546 = scalar_lea.sflag [#allocation3], 1
    %1547 = vsyncpa %s1546, 1

</llo_original>
